<compile_context>
chip_gen: v5e
topology: v5e:2x2
jax: 0.10.0
libtpu: 0.0.40
codegen_flags: <defaults>
</compile_context>

<pallas_src>
import functools

import jax
import jax.numpy as jnp
from jax.experimental import pallas as pl
from jax.experimental.pallas import tpu as pltpu


def _downsample_kernel(x_main_ref, x_halo_ref, w_ref, o_ref, patch_ref, *,
                       th, Wo, Cq, Cout, co_tile, negative_slope):
    """One grid step: `th` output rows of one image.

    x_main_ref: (1, th, 2, Wo+1, Cq) bf16  padded row-pairs [t*th, (t+1)*th)
    x_halo_ref: (1, 1,  2, Wo+1, Cq) bf16  padded row-pair  (t+1)*th
    w_ref:      (8*Cq, Cout)         bf16  K index = kh*4*Cin + kw*Cin + c
    o_ref:      (1, Cout, th*Wo)     f32   NCHW row tile, rows flattened to lanes
    patch_ref:  (th*Wo, 8*Cq)        bf16  VMEM im2col scratch
    """
    # ---- build the im2col patch in VMEM (12 block copies, no per-row loop) ----
    for kh in range(4):
        for q in range(2):                       # kw = 2*q + b, b folded into lanes
            k8 = 2 * kh + q
            col = slice(k8 * Cq, (k8 + 1) * Cq)
            if kh < 2:
                # rows 2*i + kh  ->  pair i, parity kh (all inside the main slab)
                v = x_main_ref[0, :, kh, pl.ds(q, Wo), :]           # (th, Wo, Cq)
                patch_ref[:, col] = v.reshape(th * Wo, Cq)
            else:
                # rows 2*i + kh  ->  pair i+1, parity kh-2 (last pair is the halo)
                if th > 1:
                    v = x_main_ref[0, pl.ds(1, th - 1), kh - 2, pl.ds(q, Wo), :]
                    patch_ref[pl.ds(0, (th - 1) * Wo), col] = v.reshape(
                        (th - 1) * Wo, Cq)
                v = x_halo_ref[0, 0, kh - 2, pl.ds(q, Wo), :]       # (Wo, Cq)
                patch_ref[pl.ds((th - 1) * Wo, Wo), col] = v

    # ---- one big matmul per Cout chunk: (th*Wo, 16*Cin) x (16*Cin, co) ----
    for cs in range(0, Cout, co_tile):
        co = min(co_tile, Cout - cs)
        acc = jnp.dot(patch_ref[...], w_ref[:, cs:cs + co],
                      preferred_element_type=jnp.float32)           # (th*Wo, co)
        acc = jnp.where(acc > 0, acc, negative_slope * acc)         # LeakyReLU, f32
        # transpose on the XLU (has slack) so the store is lane-dense NCHW
        o_ref[0, cs:cs + co, :] = acc.T.astype(o_ref.dtype)         # (co, th*Wo)


def _vmem_capacity_bytes():
    try:
        return int(pltpu.get_tpu_info().vmem_capacity_bytes)
    except Exception:
        return 64 << 20          # v7x per-TensorCore VMEM; safe lower bound


def _footprint_bytes(th, Wo, Cq, Cout, co_tile):
    K16 = 8 * Cq
    main = 2 * th * 2 * (Wo + 1) * Cq * 2        # main slab, double-buffered
    halo = 2 * 2 * (Wo + 1) * Cq * 2             # halo slab, double-buffered
    wgt = 2 * K16 * Cout * 2                     # weight (assume 2 buffers)
    outb = 2 * Cout * th * Wo * 4                # output block, double-buffered
    patch = th * Wo * K16 * 2                    # im2col scratch
    acc = 2 * th * Wo * co_tile * 4              # matmul acc + activated copy
    return main + halo + wgt + outb + patch + acc


def _pick_row_tile(Ho, Wo, Cq, Cout, budget):
    """Largest divisor of Ho whose working set fits `budget`.

    th must satisfy the output-block lane constraint: th*Wo % 128 == 0 or th == Ho.
    """
    co_tile = min(Cout, 256)
    candidates = [d for d in range(1, Ho + 1)
                  if Ho % d == 0 and ((d * Wo) % 128 == 0 or d == Ho)]
    fitting = [d for d in candidates
               if d * Wo <= 8192 and _footprint_bytes(d, Wo, Cq, Cout, co_tile) <= budget]
    th = max(fitting) if fitting else min(candidates)
    return th, co_tile


def downsample_forward(x_nchw, weight_oihw, *, negative_slope=0.2):
    """Conv2d(Cin, Cout, 4, 2, 1, bias=False) + LeakyReLU(negative_slope).

    x_nchw:      (N, Cin, H, W)     float32 (PyTorch NCHW)
    weight_oihw: (Cout, Cin, 4, 4)  float32 (PyTorch OIHW)
    returns:     (N, Cout, H//2, W//2) float32 (NCHW)
    """
    N, Cin, H, W = x_nchw.shape
    Cout = weight_oihw.shape[0]
    assert weight_oihw.shape == (Cout, Cin, 4, 4)
    assert H % 2 == 0 and W % 2 == 0, "DownSample kernel assumes even H, W"
    Ho, Wo = H // 2, W // 2
    Hp = H + 2
    Cq = 2 * Cin                     # stride-2 column pair x channels (lanes)
    K16 = 8 * Cq                     # = 16 * Cin, the im2col contraction dim

    # ---- layout prep: bf16 cast fused with the transpose+pad copy; reshapes free ----
    xb = x_nchw.astype(jnp.bfloat16)
    xb = jnp.transpose(xb, (0, 2, 3, 1))                        # (N, H, W, Cin)
    xb = jnp.pad(xb, ((0, 0), (1, 1), (1, 1), (0, 0)))          # (N, Hp, Wp, Cin)
    # xq[n, rp, s, p, b*Cin+c] = xpad[n, 2*rp+s, 2*p+b, c]   (row-major -> free)
    xq = xb.reshape(N, Hp // 2, 2, Wo + 1, Cq)

    # weight (O, I, kh, kw) -> (kh*4*Cin + kw*Cin + c, o); matches the patch K order
    wq = jnp.transpose(weight_oihw, (2, 3, 1, 0)).reshape(K16, Cout)
    wq = wq.astype(jnp.bfloat16)

    # ---- per-generation tiling / VMEM budget ----
    vmem_cap = _vmem_capacity_bytes()
    th, co_tile = _pick_row_tile(Ho, Wo, Cq, Cout, budget=int(0.70 * vmem_cap))
    n_t = Ho // th
    fp = _footprint_bytes(th, Wo, Cq, Cout, co_tile)
    vmem_limit = int(min(vmem_cap - (12 << 20), max(fp + (8 << 20), 32 << 20)))

    flops = 2 * N * Ho * Wo * K16 * Cout
    bytes_accessed = (N * (Ho + n_t) * 2 * (Wo + 1) * Cq * 2    # input (+ halo re-reads)
                      + K16 * Cout * 2                          # resident weight
                      + N * Cout * Ho * Wo * 4)                 # output (f32, NCHW)

    kernel = functools.partial(_downsample_kernel, th=th, Wo=Wo, Cq=Cq,
                               Cout=Cout, co_tile=co_tile,
                               negative_slope=negative_slope)

    out_flat = pl.pallas_call(
        kernel,
        out_shape=jax.ShapeDtypeStruct((N, Cout, Ho * Wo), jnp.float32),
        grid_spec=pltpu.PrefetchScalarGridSpec(
            num_scalar_prefetch=0,
            grid=(N, n_t),
            in_specs=[
                # main slab: row-pairs [t*th, (t+1)*th)  (contiguous HBM chunk)
                pl.BlockSpec((1, th, 2, Wo + 1, Cq),
                             lambda n, t: (n, t, 0, 0, 0)),
                # 1-pair halo: row-pair (t+1)*th
                pl.BlockSpec((1, 1, 2, Wo + 1, Cq),
                             lambda n, t: (n, (t + 1) * th, 0, 0, 0)),
                # full weight, constant index_map -> stays resident in VMEM
                pl.BlockSpec((K16, Cout), lambda n, t: (0, 0)),
            ],
            out_specs=pl.BlockSpec((1, Cout, th * Wo), lambda n, t: (n, 0, t)),
            scratch_shapes=[pltpu.VMEM((th * Wo, K16), jnp.bfloat16)],
        ),
        compiler_params=pltpu.CompilerParams(
            dimension_semantics=("parallel", "parallel"),
            vmem_limit_bytes=vmem_limit,
        ),
        cost_estimate=pl.CostEstimate(flops=flops, transcendentals=0,
                                      bytes_accessed=bytes_accessed),
    )(xq, xq, wq)

    # free row-major reshape back to NCHW; no extra transpose / slice pass
    return out_flat.reshape(N, Cout, Ho, Wo).astype(x_nchw.dtype)


if __name__ == "__main__":
    key = jax.random.PRNGKey(0)
    k_x, k_w = jax.random.split(key)

    N, Cin, Cout, H, W = 2, 4, 8, 16, 16
    x = jax.random.normal(k_x, (N, Cin, H, W), dtype=jnp.float32)
    fan_in = Cin * 4 * 4
    weight = jax.random.normal(k_w, (Cout, Cin, 4, 4),
                               dtype=jnp.float32) / jnp.sqrt(fan_in)

    fwd = jax.jit(downsample_forward)
    y = fwd(x, weight)
    jax.block_until_ready(y)
    assert y.shape == (N, Cout, H // 2, W // 2)

    # Reference: XLA conv + LeakyReLU on the same bf16-rounded operands (the
    # kernel multiplies bf16 operands with f32 accumulation).
    xb = x.astype(jnp.bfloat16).astype(jnp.float32)
    wb = weight.astype(jnp.bfloat16).astype(jnp.float32)
    ref = jax.lax.conv_general_dilated(
        xb, wb, window_strides=(2, 2), padding=((1, 1), (1, 1)),
        dimension_numbers=("NCHW", "OIHW", "NCHW"),
        precision=jax.lax.Precision.HIGHEST)
    ref = jnp.where(ref > 0, ref, 0.2 * ref)
    assert jnp.allclose(y, ref, atol=1e-4, rtol=1e-4), float(
        jnp.max(jnp.abs(y - ref)))

    print("KERNEL_OK")
</pallas_src>

<mosaic_0001>
module attributes {stable_mosaic.version = 11 : i64} {
  func.func @_downsample_kernel(%arg0: i32, %arg1: i32, %arg2: memref<1x8x2x9x8xbf16, #tpu.memory_space<vmem>>, %arg3: memref<1x1x2x9x8xbf16, #tpu.memory_space<vmem>>, %arg4: memref<64x8xbf16, #tpu.memory_space<vmem>>, %arg5: memref<1x8x64xf32, #tpu.memory_space<vmem>>, %arg6: memref<64x64xbf16, #tpu.memory_space<vmem>>) attributes {dimension_semantics = [#tpu.dimension_semantics<parallel>, #tpu.dimension_semantics<parallel>], iteration_bounds = array<i64: 2, 1>, scalar_prefetch = 0 : i64, scratch_operands = 1 : i64, tpu.core_type = #tpu.core_type<tc>, window_params = [{transform_indices = @transform_0, window_bounds = array<i64: 1, 8, 2, 9, 8>}, {transform_indices = @transform_1, window_bounds = array<i64: 1, 1, 2, 9, 8>}, {pipeline_mode = #tpu.pipeline_mode<synchronous>, transform_indices = @transform_2, window_bounds = array<i64: 64, 8>}, {transform_indices = @transform_3, window_bounds = array<i64: 1, 8, 64>}]} {
    %c0 = arith.constant 0 : index
    %c0_0 = arith.constant 0 : index
    %c0_1 = arith.constant 0 : index
    %c0_2 = arith.constant 0 : index
    %c0_3 = arith.constant 0 : index
    %0 = vector.load %arg2[%c0, %c0_0, %c0_1, %c0_2, %c0_3] : memref<1x8x2x9x8xbf16, #tpu.memory_space<vmem>>, vector<1x8x1x8x8xbf16>
    %1 = vector.shape_cast %0 : vector<1x8x1x8x8xbf16> to vector<8x8x8xbf16>
    %2 = vector.shape_cast %1 : vector<8x8x8xbf16> to vector<64x8xbf16>
    %c0_4 = arith.constant 0 : index
    %c0_5 = arith.constant 0 : index
    %3 = vector.load %arg6[%c0_4, %c0_5] : memref<64x64xbf16, #tpu.memory_space<vmem>>, vector<64x8xbf16>
    tpu.vector_store %arg6[%c0_4, %c0_5], %2 {strides = array<i32>} : memref<64x64xbf16, #tpu.memory_space<vmem>>, vector<64x8xbf16>,
    %c0_6 = arith.constant 0 : index
    %c0_7 = arith.constant 0 : index
    %c0_8 = arith.constant 0 : index
    %c1 = arith.constant 1 : index
    %c0_9 = arith.constant 0 : index
    %4 = vector.load %arg2[%c0_6, %c0_7, %c0_8, %c1, %c0_9] : memref<1x8x2x9x8xbf16, #tpu.memory_space<vmem>>, vector<1x8x1x8x8xbf16>
    %5 = vector.shape_cast %4 : vector<1x8x1x8x8xbf16> to vector<8x8x8xbf16>
    %6 = vector.shape_cast %5 : vector<8x8x8xbf16> to vector<64x8xbf16>
    %c0_10 = arith.constant 0 : index
    %c8 = arith.constant 8 : index
    %7 = vector.load %arg6[%c0_10, %c8] : memref<64x64xbf16, #tpu.memory_space<vmem>>, vector<64x8xbf16>
    tpu.vector_store %arg6[%c0_10, %c8], %6 {strides = array<i32>} : memref<64x64xbf16, #tpu.memory_space<vmem>>, vector<64x8xbf16>,
    %c0_11 = arith.constant 0 : index
    %c0_12 = arith.constant 0 : index
    %c1_13 = arith.constant 1 : index
    %c0_14 = arith.constant 0 : index
    %c0_15 = arith.constant 0 : index
    %8 = vector.load %arg2[%c0_11, %c0_12, %c1_13, %c0_14, %c0_15] : memref<1x8x2x9x8xbf16, #tpu.memory_space<vmem>>, vector<1x8x1x8x8xbf16>
    %9 = vector.shape_cast %8 : vector<1x8x1x8x8xbf16> to vector<8x8x8xbf16>
    %10 = vector.shape_cast %9 : vector<8x8x8xbf16> to vector<64x8xbf16>
    %c0_16 = arith.constant 0 : index
    %c16 = arith.constant 16 : index
    %11 = vector.load %arg6[%c0_16, %c16] : memref<64x64xbf16, #tpu.memory_space<vmem>>, vector<64x8xbf16>
    tpu.vector_store %arg6[%c0_16, %c16], %10 {strides = array<i32>} : memref<64x64xbf16, #tpu.memory_space<vmem>>, vector<64x8xbf16>,
    %c0_17 = arith.constant 0 : index
    %c0_18 = arith.constant 0 : index
    %c1_19 = arith.constant 1 : index
    %c1_20 = arith.constant 1 : index
    %c0_21 = arith.constant 0 : index
    %12 = vector.load %arg2[%c0_17, %c0_18, %c1_19, %c1_20, %c0_21] : memref<1x8x2x9x8xbf16, #tpu.memory_space<vmem>>, vector<1x8x1x8x8xbf16>
    %13 = vector.shape_cast %12 : vector<1x8x1x8x8xbf16> to vector<8x8x8xbf16>
    %14 = vector.shape_cast %13 : vector<8x8x8xbf16> to vector<64x8xbf16>
    %c0_22 = arith.constant 0 : index
    %c24 = arith.constant 24 : index
    %15 = vector.load %arg6[%c0_22, %c24] : memref<64x64xbf16, #tpu.memory_space<vmem>>, vector<64x8xbf16>
    tpu.vector_store %arg6[%c0_22, %c24], %14 {strides = array<i32>} : memref<64x64xbf16, #tpu.memory_space<vmem>>, vector<64x8xbf16>,
    %c0_23 = arith.constant 0 : index
    %c1_24 = arith.constant 1 : index
    %c0_25 = arith.constant 0 : index
    %c0_26 = arith.constant 0 : index
    %c0_27 = arith.constant 0 : index
    %16 = vector.load %arg2[%c0_23, %c1_24, %c0_25, %c0_26, %c0_27] : memref<1x8x2x9x8xbf16, #tpu.memory_space<vmem>>, vector<1x7x1x8x8xbf16>
    %17 = vector.shape_cast %16 : vector<1x7x1x8x8xbf16> to vector<7x8x8xbf16>
    %18 = vector.shape_cast %17 : vector<7x8x8xbf16> to vector<56x8xbf16>
    %c0_28 = arith.constant 0 : index
    %c32 = arith.constant 32 : index
    %19 = vector.load %arg6[%c0_28, %c32] : memref<64x64xbf16, #tpu.memory_space<vmem>>, vector<56x8xbf16>
    tpu.vector_store %arg6[%c0_28, %c32], %18 {strides = array<i32>} : memref<64x64xbf16, #tpu.memory_space<vmem>>, vector<56x8xbf16>,
    %c0_29 = arith.constant 0 : index
    %c0_30 = arith.constant 0 : index
    %c0_31 = arith.constant 0 : index
    %c0_32 = arith.constant 0 : index
    %c0_33 = arith.constant 0 : index
    %20 = vector.load %arg3[%c0_29, %c0_30, %c0_31, %c0_32, %c0_33] : memref<1x1x2x9x8xbf16, #tpu.memory_space<vmem>>, vector<1x1x1x8x8xbf16>
    %21 = vector.shape_cast %20 : vector<1x1x1x8x8xbf16> to vector<8x8xbf16>
    %c56 = arith.constant 56 : index
    %c32_34 = arith.constant 32 : index
    %22 = vector.load %arg6[%c56, %c32_34] : memref<64x64xbf16, #tpu.memory_space<vmem>>, vector<8x8xbf16>
    tpu.vector_store %arg6[%c56, %c32_34], %21 {strides = array<i32>} : memref<64x64xbf16, #tpu.memory_space<vmem>>, vector<8x8xbf16>,
    %c0_35 = arith.constant 0 : index
    %c1_36 = arith.constant 1 : index
    %c0_37 = arith.constant 0 : index
    %c1_38 = arith.constant 1 : index
    %c0_39 = arith.constant 0 : index
    %23 = vector.load %arg2[%c0_35, %c1_36, %c0_37, %c1_38, %c0_39] : memref<1x8x2x9x8xbf16, #tpu.memory_space<vmem>>, vector<1x7x1x8x8xbf16>
    %24 = vector.shape_cast %23 : vector<1x7x1x8x8xbf16> to vector<7x8x8xbf16>
    %25 = vector.shape_cast %24 : vector<7x8x8xbf16> to vector<56x8xbf16>
    %c0_40 = arith.constant 0 : index
    %c40 = arith.constant 40 : index
    %26 = vector.load %arg6[%c0_40, %c40] : memref<64x64xbf16, #tpu.memory_space<vmem>>, vector<56x8xbf16>
    tpu.vector_store %arg6[%c0_40, %c40], %25 {strides = array<i32>} : memref<64x64xbf16, #tpu.memory_space<vmem>>, vector<56x8xbf16>,
    %c0_41 = arith.constant 0 : index
    %c0_42 = arith.constant 0 : index
    %c0_43 = arith.constant 0 : index
    %c1_44 = arith.constant 1 : index
    %c0_45 = arith.constant 0 : index
    %27 = vector.load %arg3[%c0_41, %c0_42, %c0_43, %c1_44, %c0_45] : memref<1x1x2x9x8xbf16, #tpu.memory_space<vmem>>, vector<1x1x1x8x8xbf16>
    %28 = vector.shape_cast %27 : vector<1x1x1x8x8xbf16> to vector<8x8xbf16>
    %c56_46 = arith.constant 56 : index
    %c40_47 = arith.constant 40 : index
    %29 = vector.load %arg6[%c56_46, %c40_47] : memref<64x64xbf16, #tpu.memory_space<vmem>>, vector<8x8xbf16>
    tpu.vector_store %arg6[%c56_46, %c40_47], %28 {strides = array<i32>} : memref<64x64xbf16, #tpu.memory_space<vmem>>, vector<8x8xbf16>,
    %c0_48 = arith.constant 0 : index
    %c1_49 = arith.constant 1 : index
    %c1_50 = arith.constant 1 : index
    %c0_51 = arith.constant 0 : index
    %c0_52 = arith.constant 0 : index
    %30 = vector.load %arg2[%c0_48, %c1_49, %c1_50, %c0_51, %c0_52] : memref<1x8x2x9x8xbf16, #tpu.memory_space<vmem>>, vector<1x7x1x8x8xbf16>
    %31 = vector.shape_cast %30 : vector<1x7x1x8x8xbf16> to vector<7x8x8xbf16>
    %32 = vector.shape_cast %31 : vector<7x8x8xbf16> to vector<56x8xbf16>
    %c0_53 = arith.constant 0 : index
    %c48 = arith.constant 48 : index
    %33 = vector.load %arg6[%c0_53, %c48] : memref<64x64xbf16, #tpu.memory_space<vmem>>, vector<56x8xbf16>
    tpu.vector_store %arg6[%c0_53, %c48], %32 {strides = array<i32>} : memref<64x64xbf16, #tpu.memory_space<vmem>>, vector<56x8xbf16>,
    %c0_54 = arith.constant 0 : index
    %c0_55 = arith.constant 0 : index
    %c1_56 = arith.constant 1 : index
    %c0_57 = arith.constant 0 : index
    %c0_58 = arith.constant 0 : index
    %34 = vector.load %arg3[%c0_54, %c0_55, %c1_56, %c0_57, %c0_58] : memref<1x1x2x9x8xbf16, #tpu.memory_space<vmem>>, vector<1x1x1x8x8xbf16>
    %35 = vector.shape_cast %34 : vector<1x1x1x8x8xbf16> to vector<8x8xbf16>
    %c56_59 = arith.constant 56 : index
    %c48_60 = arith.constant 48 : index
    %36 = vector.load %arg6[%c56_59, %c48_60] : memref<64x64xbf16, #tpu.memory_space<vmem>>, vector<8x8xbf16>
    tpu.vector_store %arg6[%c56_59, %c48_60], %35 {strides = array<i32>} : memref<64x64xbf16, #tpu.memory_space<vmem>>, vector<8x8xbf16>,
    %c0_61 = arith.constant 0 : index
    %c1_62 = arith.constant 1 : index
    %c1_63 = arith.constant 1 : index
    %c1_64 = arith.constant 1 : index
    %c0_65 = arith.constant 0 : index
    %37 = vector.load %arg2[%c0_61, %c1_62, %c1_63, %c1_64, %c0_65] : memref<1x8x2x9x8xbf16, #tpu.memory_space<vmem>>, vector<1x7x1x8x8xbf16>
    %38 = vector.shape_cast %37 : vector<1x7x1x8x8xbf16> to vector<7x8x8xbf16>
    %39 = vector.shape_cast %38 : vector<7x8x8xbf16> to vector<56x8xbf16>
    %c0_66 = arith.constant 0 : index
    %c56_67 = arith.constant 56 : index
    %40 = vector.load %arg6[%c0_66, %c56_67] : memref<64x64xbf16, #tpu.memory_space<vmem>>, vector<56x8xbf16>
    tpu.vector_store %arg6[%c0_66, %c56_67], %39 {strides = array<i32>} : memref<64x64xbf16, #tpu.memory_space<vmem>>, vector<56x8xbf16>,
    %c0_68 = arith.constant 0 : index
    %c0_69 = arith.constant 0 : index
    %c1_70 = arith.constant 1 : index
    %c1_71 = arith.constant 1 : index
    %c0_72 = arith.constant 0 : index
    %41 = vector.load %arg3[%c0_68, %c0_69, %c1_70, %c1_71, %c0_72] : memref<1x1x2x9x8xbf16, #tpu.memory_space<vmem>>, vector<1x1x1x8x8xbf16>
    %42 = vector.shape_cast %41 : vector<1x1x1x8x8xbf16> to vector<8x8xbf16>
    %c56_73 = arith.constant 56 : index
    %c56_74 = arith.constant 56 : index
    %43 = vector.load %arg6[%c56_73, %c56_74] : memref<64x64xbf16, #tpu.memory_space<vmem>>, vector<8x8xbf16>
    tpu.vector_store %arg6[%c56_73, %c56_74], %42 {strides = array<i32>} : memref<64x64xbf16, #tpu.memory_space<vmem>>, vector<8x8xbf16>,
    %c0_75 = arith.constant 0 : index
    %c0_76 = arith.constant 0 : index
    %44 = vector.load %arg6[%c0_75, %c0_76] : memref<64x64xbf16, #tpu.memory_space<vmem>>, vector<64x64xbf16>
    %c0_77 = arith.constant 0 : index
    %c0_78 = arith.constant 0 : index
    %45 = vector.load %arg4[%c0_77, %c0_78] : memref<64x8xbf16, #tpu.memory_space<vmem>>, vector<64x8xbf16>
    %cst = arith.constant dense<0.000000e+00> : vector<64x8xf32>
    %46 = tpu.matmul %44, %45, %cst {dimension_numbers = #tpu.dot_dimension_numbers<[1], [0], [0], [1], [0, 0, 1, 1], [], []>} : vector<64x64xbf16>, vector<64x8xbf16>, vector<64x8xf32> -> vector<64x8xf32>
    %cst_79 = arith.constant 0.000000e+00 : f32
    %47 = vector.broadcast %cst_79 : f32 to vector<64x8xf32>
    %48 = arith.cmpf ogt, %46, %47 : vector<64x8xf32>
    %cst_80 = arith.constant 2.000000e-01 : f32
    %49 = vector.broadcast %cst_80 : f32 to vector<64x8xf32>
    %50 = arith.mulf %49, %46 : vector<64x8xf32>
    %51 = arith.select %48, %46, %50 : vector<64x8xi1>, vector<64x8xf32>
    %52 = tpu.transpose %51, [1, 0] : vector<64x8xf32> -> vector<8x64xf32>
    %c0_81 = arith.constant 0 : index
    %c0_82 = arith.constant 0 : index
    %c0_83 = arith.constant 0 : index
    %53 = vector.load %arg5[%c0_81, %c0_82, %c0_83] : memref<1x8x64xf32, #tpu.memory_space<vmem>>, vector<1x8x64xf32>
    %54 = vector.shape_cast %53 : vector<1x8x64xf32> to vector<8x64xf32>
    %55 = vector.shape_cast %52 : vector<8x64xf32> to vector<1x8x64xf32>
    tpu.vector_store %arg5[%c0_81, %c0_82, %c0_83], %55 {strides = array<i32>} : memref<1x8x64xf32, #tpu.memory_space<vmem>>, vector<1x8x64xf32>,
    return
  }
  func.func @transform_0(%arg0: i32, %arg1: i32) -> (i32, i32, i32, i32, i32) {
    %c0_i32 = arith.constant 0 : i32
    %c0_i32_0 = arith.constant 0 : i32
    %c0_i32_1 = arith.constant 0 : i32
    %c0_i32_2 = arith.constant 0 : i32
    return %arg0, %arg1, %c0_i32, %c0_i32_0, %c0_i32_1 : i32, i32, i32, i32, i32
  }
  func.func @transform_1(%arg0: i32, %arg1: i32) -> (i32, i32, i32, i32, i32) {
    %c1_i32 = arith.constant 1 : i32
    %0 = arith.addi %arg1, %c1_i32 : i32
    %c8_i32 = arith.constant 8 : i32
    %1 = arith.muli %0, %c8_i32 : i32
    %c0_i32 = arith.constant 0 : i32
    %c0_i32_0 = arith.constant 0 : i32
    %c0_i32_1 = arith.constant 0 : i32
    %c0_i32_2 = arith.constant 0 : i32
    return %arg0, %1, %c0_i32, %c0_i32_0, %c0_i32_1 : i32, i32, i32, i32, i32
  }
  func.func @transform_2(%arg0: i32, %arg1: i32) -> (i32, i32) {
    %c0_i32 = arith.constant 0 : i32
    %c0_i32_0 = arith.constant 0 : i32
    %c0_i32_1 = arith.constant 0 : i32
    return %c0_i32, %c0_i32_0 : i32, i32
  }
  func.func @transform_3(%arg0: i32, %arg1: i32) -> (i32, i32, i32) {
    %c0_i32 = arith.constant 0 : i32
    %c0_i32_0 = arith.constant 0 : i32
    return %arg0, %c0_i32, %arg1 : i32, i32, i32
  }
}

</mosaic_0001>

<llo_original>
// kernel: downsample_forward.1
$region0: #{downsample_forward.1}
  #allocation0 [shape = 'u32[]', space=smem, size = 0x4, offset = 0x4, fixed_abs, tag = 'smem constant byte address 0x4 - core index']
  #allocation1 [shape = 'u32[72,128]{1,0:T(1,128)}', space=vmem, size = 0x9000, scoped, tag = 'internal scratch']
  #allocation2 [shape = 'bf16[64,64]{1,0:T(8,128)(2,1)}', space=vmem, size = 0x4000, scoped, tag = 'scratch operand']
  %s0 = inlined_call_operand.vmem [shape: bf16[2,9,2,9,8], index: 0, kind: input, shape index: {}, may-alias: {0,1}]
  %s1 = inlined_call_operand.vmem [shape: bf16[2,9,2,9,8], index: 1, kind: input, shape index: {}, may-alias: {0,1}]
  %s2 = inlined_call_operand.vmem [shape: bf16[64,8], index: 2, kind: input, shape index: {}]
  %s3 = inlined_call_operand.vmem [shape: f32[2,8,64], index: 3, kind: output, shape index: {}]
  %s4 = sld [smem:[#allocation0]]
  $region45: #{downsample_forward.1} parent=0
    _
  %s6 = ssub.s32 1, %s4
  %s7 = scalar_select 0, %s6, %s4
  loop: start=0, step=1, limit=4
  $region2: #{downsample_forward.1} parent=0 // loop_pre_header
    _
  $region3: #{downsample_forward.1} parent=0 // loop_header
    %s9 = sphi 0, %s13
    %p10 = scmp.ge.s32.totalorder %s9, 4
    %s16 = sphi 0, %s28
    %s17 = sphi 0, %s24
    %s18 = sphi 0, %s16
    %s19 = sphi 0, %s17
    %s20 = sphi 0, %s18
    %s21 = sphi 0, %s19
    %s33 = sphi 0, %s35
    %s36 = sphi 0, %s33
    %s37 = sphi 0, %s36
    %s53 = sphi 0, %s37
    %s65 = sphi 0, %s67
    %s68 = sphi 0, %s65
    %s69 = sphi 0, %s68
    %s85 = sphi 0, %s69
    %s89 = sphi 0, %s89
    %s91 = sphi 0, %s89
    %s92 = sphi 0, %s91
    %s106 = sphi 0, %s92
    %s114 = sphi 0, %s116
    %s117 = sphi 0, %s114
    %s118 = sphi 0, %s117
    %s134 = sphi 0, %s118
  $region4: #{downsample_forward.1} parent=0 // loop_header_branch
    %12 = sbr.rel (%p10) target = $region8
  $region5: #{downsample_forward.1} parent=0 // loop_body
    %s14 = ssub.s32 %s9, 1
    %s15 = ssub.s32 %s9, 2
    %s22 = sadd.s32 1, %s17
    %p23 = scmp.ge.s32.totalorder %s22, 1
    %s24 = scalar_select %p23, 0, %s22
    %s25 = sadd.s32 1, %s16
    %s26 = scalar_select %p23, %s25, %s16
    %p27 = scmp.ge.s32.totalorder %s26, 2
    %s28 = scalar_select %p27, 0, %s26
    %s29 = ssub.s32 %s16, %s28
    %s30 = ssub.s32 %s17, %s24
    %s31 = sor.u32 %s29, %s30
    %p32 = scmp.eq.s32.totalorder %s31, 0
    %s34 = sadd.s32 %s33, 1
    %s35 = scalar_select %p32, %s33, %s34
    %p38 = pneg %p32
    %p39 = scmp.eq.s32.totalorder %s9, 1
    %p40 = por %p38, %p39
    %p41 = scmp.ne.s32.totalorder %s33, %s36
    %p42 = scmp.eq.s32.totalorder %s9, 0
    %p43 = por %p41, %p42
    %p44 = scmp.ne.s32.totalorder %s33, %s36
    %p45 = scmp.eq.s32.totalorder %s14, 1
    %p46 = por %p44, %p45
    %p47 = scmp.ne.s32.totalorder %s36, %s37
    %p48 = scmp.eq.s32.totalorder %s14, 0
    %p49 = por %p47, %p48
    %p50 = scmp.ne.s32.totalorder %s36, %s37
    %p51 = scmp.eq.s32.totalorder %s15, 1
    %p52 = por %p50, %p51
    %p54 = scmp.ne.s32.totalorder %s37, %s53
    %p55 = scmp.eq.s32.totalorder %s15, 0
    %p56 = por %p54, %p55
    %s57 = sadd.s32 %s17, 1
    %s58 = smul.u32 %s57, 8
    %s59 = sadd.s32 %s24, 1
    %s60 = smul.u32 %s59, 8
    %s61 = ssub.s32 %s16, %s28
    %s62 = ssub.s32 %s58, %s60
    %s63 = sor.u32 %s61, %s62
    %p64 = scmp.eq.s32.totalorder %s63, 0
    %s66 = sadd.s32 %s65, 1
    %s67 = scalar_select %p64, %s65, %s66
    %p70 = pneg %p64
    %p71 = scmp.eq.s32.totalorder %s9, 1
    %p72 = por %p70, %p71
    %p73 = scmp.ne.s32.totalorder %s65, %s68
    %p74 = scmp.eq.s32.totalorder %s9, 0
    %p75 = por %p73, %p74
    %p76 = scmp.ne.s32.totalorder %s65, %s68
    %p77 = scmp.eq.s32.totalorder %s14, 1
    %p78 = por %p76, %p77
    %p79 = scmp.ne.s32.totalorder %s68, %s69
    %p80 = scmp.eq.s32.totalorder %s14, 0
    %p81 = por %p79, %p80
    %p82 = scmp.ne.s32.totalorder %s68, %s69
    %p83 = scmp.eq.s32.totalorder %s15, 1
    %p84 = por %p82, %p83
    %p86 = scmp.ne.s32.totalorder %s69, %s85
    %p87 = scmp.eq.s32.totalorder %s15, 0
    %p88 = por %p86, %p87
    %s90 = sadd.s32 %s89, 1
    %p93 = scmp.eq.s32.totalorder %s9, 1
    %p94 = scmp.ne.s32.totalorder %s89, %s91
    %p95 = scmp.eq.s32.totalorder %s9, 0
    %p96 = por %p94, %p95
    %p97 = scmp.ne.s32.totalorder %s89, %s91
    %p98 = scmp.eq.s32.totalorder %s14, 1
    %p99 = por %p97, %p98
    %p100 = scmp.ne.s32.totalorder %s91, %s92
    %p101 = scmp.eq.s32.totalorder %s14, 0
    %p102 = por %p100, %p101
    %p103 = scmp.ne.s32.totalorder %s91, %s92
    %p104 = scmp.eq.s32.totalorder %s15, 1
    %p105 = por %p103, %p104
    %p107 = scmp.ne.s32.totalorder %s92, %s106
    %p108 = scmp.eq.s32.totalorder %s15, 0
    %p109 = por %p107, %p108
    %s110 = ssub.s32 %s16, %s28
    %s111 = ssub.s32 %s17, %s24
    %s112 = sor.u32 %s110, %s111
    %p113 = scmp.eq.s32.totalorder %s112, 0
    %s115 = sadd.s32 %s114, 1
    %s116 = scalar_select %p113, %s114, %s115
    %p119 = pneg %p113
    %p120 = scmp.eq.s32.totalorder %s9, 1
    %p121 = por %p119, %p120
    %p122 = scmp.ne.s32.totalorder %s114, %s117
    %p123 = scmp.eq.s32.totalorder %s9, 0
    %p124 = por %p122, %p123
    %p125 = scmp.ne.s32.totalorder %s114, %s117
    %p126 = scmp.eq.s32.totalorder %s14, 1
    %p127 = por %p125, %p126
    %p128 = scmp.ne.s32.totalorder %s117, %s118
    %p129 = scmp.eq.s32.totalorder %s14, 0
    %p130 = por %p128, %p129
    %p131 = scmp.ne.s32.totalorder %s117, %s118
    %p132 = scmp.eq.s32.totalorder %s15, 1
    %p133 = por %p131, %p132
    %p135 = scmp.ne.s32.totalorder %s118, %s134
    %p136 = scmp.eq.s32.totalorder %s15, 0
    %p137 = por %p135, %p136
    %p138 = scmp.le.s32.totalorder 1, %s9
    %p139 = scmp.lt.s32.totalorder %s9, 3
    %p140 = pnand %p138, %p139
    %p141 = pneg %p140
    // Predicated region
    $region9: #{downsample_forward.1} parent=5 // pred_check
      _
    $region10: #{downsample_forward.1} parent=5 // pred_check_branch
      %143 = sbr.rel (%p140) target = $region12
    $region11: #{downsample_forward.1} parent=5 // pred_region
      %s144 = ssub.s32 %s9, 1
      // Predicated region
      $region13: #{downsample_forward.1} parent=11 // pred_check
        %p145 = pneg %p102
      $region14: #{downsample_forward.1} parent=11 // pred_check_branch
        %147 = sbr.rel (%p145) target = $region16
      $region15: #{downsample_forward.1} parent=11 // pred_region
        _
      $region16: #{downsample_forward.1} parent=11 // pred_fallthru
        _
    $region12: #{downsample_forward.1} parent=5 // pred_fallthru
      _
    %p148 = scmp.lt.s32.totalorder %s9, 2
    // Predicated region
    $region17: #{downsample_forward.1} parent=5 // pred_check
      %p149 = pneg %p148
    $region18: #{downsample_forward.1} parent=5 // pred_check_branch
      %151 = sbr.rel (%p149) target = $region20
    $region19: #{downsample_forward.1} parent=5 // pred_region
      // Predicated region
      $region21: #{downsample_forward.1} parent=19 // pred_check
        %p152 = pneg %p43
      $region22: #{downsample_forward.1} parent=19 // pred_check_branch
        %154 = sbr.rel (%p152) target = $region24
      $region23: #{downsample_forward.1} parent=19 // pred_region
        %s155 = smul.u32 8, %s17
        %s156 = ssub.s32 9, %s155
        %p157 = scmp.lt.s32.totalorder %s156, 8
        %s158 = scalar_select %p157, %s156, 8
        %s159 = smul.u32 4, %s158
        %s160 = smul.u32 %s159, 2
        %s161 = smul.u32 %s160, 2
        %p162 = scmp.lt.s32.totalorder %s16, 1
        %s163 = scalar_select %p162, %s16, 1
        %p164 = scmp.lt.s32.totalorder %s155, 8
        %s165 = scalar_select %p164, %s155, 8
        %s166 = smul.addr %s165, 4
        %s167 = smul.addr %s163, 36
        %s168 = sadd.s32 %s166, %s167
        %s169 = smul.addr %s168, 4
        %s170 = scalar_lea.vmem %s0, %s169
        %s171 = smul.u32 8, %s17
        %s172 = ssub.s32 9, %s171
        %p173 = scmp.lt.s32.totalorder %s172, 8
        %s174 = scalar_select %p173, %s172, 8
        %s175 = smul.u32 4, %s174
        %s176 = smul.u32 %s175, 2
        %s177 = smul.u32 %s176, 2
      $region24: #{downsample_forward.1} parent=19 // pred_fallthru
        _
      // Predicated region
      $region25: #{downsample_forward.1} parent=19 // pred_check
        %p178 = pneg %p75
      $region26: #{downsample_forward.1} parent=19 // pred_check_branch
        %180 = sbr.rel (%p178) target = $region28
      $region27: #{downsample_forward.1} parent=19 // pred_region
        %s181 = sadd.s32 %s17, 1
        %s182 = smul.u32 %s181, 8
        %p183 = scmp.lt.s32.totalorder %s16, 1
        %s184 = scalar_select %p183, %s16, 1
        %p185 = scmp.lt.s32.totalorder %s182, 8
        %s186 = scalar_select %p185, %s182, 8
        %s187 = smul.addr %s186, 4
        %s188 = smul.addr %s184, 36
        %s189 = sadd.s32 %s187, %s188
        %s190 = smul.addr %s189, 4
        %s191 = scalar_lea.vmem %s1, %s190
        %s192 = sadd.s32 %s17, 1
        %s193 = smul.u32 %s192, 8
      $region28: #{downsample_forward.1} parent=19 // pred_fallthru
        _
    $region20: #{downsample_forward.1} parent=5 // pred_fallthru
      _
    %p194 = scmp.le.s32.totalorder 1, %s9
    %p195 = scmp.lt.s32.totalorder %s9, 3
    %p196 = pnand %p194, %p195
    %p197 = pneg %p196
    // Predicated region
    $region29: #{downsample_forward.1} parent=5 // pred_check
      _
    $region30: #{downsample_forward.1} parent=5 // pred_check_branch
      %199 = sbr.rel (%p196) target = $region32
    $region31: #{downsample_forward.1} parent=5 // pred_region
      %s200 = ssub.s32 %s9, 1
      %s201 = smul.u32 8, %s19
      %s202 = ssub.s32 9, %s201
      %p203 = scmp.lt.s32.totalorder %s202, 8
      %s204 = scalar_select %p203, %s202, 8
      %s205 = smul.u32 4, %s204
      %s206 = smul.u32 %s205, 2
      %s207 = smul.u32 %s206, 2
      %p208 = scmp.lt.s32.totalorder %s18, 1
      %s209 = scalar_select %p208, %s18, 1
      %p210 = scmp.lt.s32.totalorder %s201, 8
      %s211 = scalar_select %p210, %s201, 8
      %s212 = smul.addr %s211, 4
      %s213 = smul.addr %s209, 36
      %s214 = sadd.s32 %s212, %s213
      %s215 = smul.addr %s214, 4
      %s216 = scalar_lea.vmem %s0, %s215
      %p217 = pneg %p49
      %p218 = pneg %p46
      %s219 = sadd.s32 %s19, 1
      %s220 = smul.u32 %s219, 8
      %p221 = scmp.lt.s32.totalorder %s18, 1
      %s222 = scalar_select %p221, %s18, 1
      %p223 = scmp.lt.s32.totalorder %s220, 8
      %s224 = scalar_select %p223, %s220, 8
      %s225 = smul.addr %s224, 4
      %s226 = smul.addr %s222, 36
      %s227 = sadd.s32 %s225, %s226
      %s228 = smul.addr %s227, 4
      %s229 = scalar_lea.vmem %s1, %s228
      %p230 = pneg %p81
      %p231 = pneg %p78
      %p232 = pneg %p102
      %p233 = pneg %p99
      %p234 = pneg %p130
      %p235 = pneg %p127
      %p236 = scmp.lt.s32.totalorder %s18, 1
      %s237 = scalar_select %p236, %s18, 1
      %p238 = scmp.lt.s32.totalorder %s19, 0
      %s239 = scalar_select %p238, %s19, 0
      %s240 = sadd.s32 %s239, %s237
      %s241 = smul.addr %s240, 8
      %s242 = scalar_lea.vmem %s3, %s241
      %s243 = smul.u32 8, %s19
      %s244 = ssub.s32 9, %s243
      %p245 = scmp.lt.s32.totalorder %s244, 8
      %s246 = scalar_select %p245, %s244, 8
      %s247 = smul.u32 4, %s246
      %s248 = smul.u32 %s247, 2
      %s249 = smul.u32 %s248, 2
      %p250 = scmp.lt.s32.totalorder %s18, 1
      %s251 = scalar_select %p250, %s18, 1
      %p252 = scmp.lt.s32.totalorder %s243, 8
      %s253 = scalar_select %p252, %s243, 8
      %s254 = smul.addr %s253, 4
      %s255 = smul.addr %s251, 36
      %s256 = sadd.s32 %s254, %s255
      %s257 = smul.addr %s256, 4
      %s258 = scalar_lea.vmem %s0, %s257
      %s259 = smul.u32 8, %s19
      %s260 = ssub.s32 9, %s259
      %p261 = scmp.lt.s32.totalorder %s260, 8
      %s262 = scalar_select %p261, %s260, 8
      %s263 = smul.u32 4, %s262
      %s264 = smul.u32 %s263, 2
      %s265 = smul.u32 %s264, 2
      %s266 = sadd.s32 %s19, 1
      %s267 = smul.u32 %s266, 8
      %p268 = scmp.lt.s32.totalorder %s18, 1
      %s269 = scalar_select %p268, %s18, 1
      %p270 = scmp.lt.s32.totalorder %s267, 8
      %s271 = scalar_select %p270, %s267, 8
      %s272 = smul.addr %s271, 4
      %s273 = smul.addr %s269, 36
      %s274 = sadd.s32 %s272, %s273
      %s275 = smul.addr %s274, 4
      %s276 = scalar_lea.vmem %s1, %s275
      %s277 = sadd.s32 %s19, 1
      %s278 = smul.u32 %s277, 8
      %p279 = scmp.lt.s32.totalorder %s18, 1
      %s280 = scalar_select %p279, %s18, 1
      %p281 = scmp.lt.s32.totalorder %s19, 0
      %s282 = scalar_select %p281, %s19, 0
      %s283 = sadd.s32 %s282, %s280
      %s284 = smul.addr %s283, 8
      %s285 = scalar_lea.vmem %s3, %s284
      %v287 = vld [vmem:[%s258] sm:$0xf]
      %v288 = vld [vmem:[%s258 + $0x10] sm:$0xf]
      %v289 = vld [vmem:[%s258 + $0x20] sm:$0xf]
      %v290 = vld [vmem:[%s258 + $0x30] sm:$0xf]
      %v291 = vld [vmem:[%s258 + $0x40] sm:$0xf]
      %v292 = vld [vmem:[%s258 + $0x50] sm:$0xf]
      %v293 = vld [vmem:[%s258 + $0x60] sm:$0xf]
      %v294 = vld [vmem:[%s258 + $0x70] sm:$0xf]
      %vm295 = vcmask 60416
      %296 = vst.msk [vmem:[#allocation2] sm:$0xf] %vm295, %v287
      %297 = vst.msk [vmem:[#allocation2 + $0x4] sm:$0xf] %vm295, %v288
      %298 = vst.msk [vmem:[#allocation2 + $0x8] sm:$0xf] %vm295, %v289
      %299 = vst.msk [vmem:[#allocation2 + $0xc] sm:$0xf] %vm295, %v290
      %300 = vst.msk [vmem:[#allocation2 + $0x10] sm:$0xf] %vm295, %v291
      %301 = vst.msk [vmem:[#allocation2 + $0x14] sm:$0xf] %vm295, %v292
      %302 = vst.msk [vmem:[#allocation2 + $0x18] sm:$0xf] %vm295, %v293
      %303 = vst.msk [vmem:[#allocation2 + $0x1c] sm:$0xf] %vm295, %v294
      %v304 = vld [vmem:[%s258] sm:$0xf]
      %v305 = vld [vmem:[%s258 + $0x4] sm:$0x1]
      %v306 = vld [vmem:[%s258 + $0x10] sm:$0xf]
      %v307 = vld [vmem:[%s258 + $0x14] sm:$0x1]
      %v308 = vld [vmem:[%s258 + $0x20] sm:$0xf]
      %v309 = vld [vmem:[%s258 + $0x24] sm:$0x1]
      %v310 = vld [vmem:[%s258 + $0x30] sm:$0xf]
      %v311 = vld [vmem:[%s258 + $0x34] sm:$0x1]
      %v312 = vld [vmem:[%s258 + $0x40] sm:$0xf]
      %v313 = vld [vmem:[%s258 + $0x44] sm:$0x1]
      %v314 = vld [vmem:[%s258 + $0x50] sm:$0xf]
      %v315 = vld [vmem:[%s258 + $0x54] sm:$0x1]
      %v316 = vld [vmem:[%s258 + $0x60] sm:$0xf]
      %v317 = vld [vmem:[%s258 + $0x64] sm:$0x1]
      %v318 = vld [vmem:[%s258 + $0x70] sm:$0xf]
      %v319 = vld [vmem:[%s258 + $0x74] sm:$0x1]
      %vm320 = vsmask.f32 3328
      %vm321 = vsmask.f32 7440
      %vm322 = vmor %vm320, %vm321
      %v324 = vshrl.u32 %v304, 16
      %v326 = vrot.slane %v324, 4
      %v327 = vshll.u32 %v304, 16
      %v329 = vrot.slane %v327, 5
      %v330 = vor.u32 %v326, %v329
      %v331 = vrot.slane %v330, 4
      %v333 = vshll.u32 %v305, 16
      %v335 = vrot.slane %v333, 5
      %v336 = vsel %vm322, %v331, %v335
      %v338 = vshrl.u32 %v306, 16
      %v340 = vrot.slane %v338, 4
      %v341 = vshll.u32 %v306, 16
      %v343 = vrot.slane %v341, 5
      %v344 = vor.u32 %v340, %v343
      %v345 = vrot.slane %v344, 4
      %v347 = vshll.u32 %v307, 16
      %v349 = vrot.slane %v347, 5
      %v350 = vsel %vm322, %v345, %v349
      %v352 = vshrl.u32 %v308, 16
      %v354 = vrot.slane %v352, 4
      %v355 = vshll.u32 %v308, 16
      %v357 = vrot.slane %v355, 5
      %v358 = vor.u32 %v354, %v357
      %v359 = vrot.slane %v358, 4
      %v361 = vshll.u32 %v309, 16
      %v363 = vrot.slane %v361, 5
      %v364 = vsel %vm322, %v359, %v363
      %v366 = vshrl.u32 %v310, 16
      %v368 = vrot.slane %v366, 4
      %v369 = vshll.u32 %v310, 16
      %v371 = vrot.slane %v369, 5
      %v372 = vor.u32 %v368, %v371
      %v373 = vrot.slane %v372, 4
      %v375 = vshll.u32 %v311, 16
      %v377 = vrot.slane %v375, 5
      %v378 = vsel %vm322, %v373, %v377
      %v380 = vshrl.u32 %v312, 16
      %v382 = vrot.slane %v380, 4
      %v383 = vshll.u32 %v312, 16
      %v385 = vrot.slane %v383, 5
      %v386 = vor.u32 %v382, %v385
      %v387 = vrot.slane %v386, 4
      %v389 = vshll.u32 %v313, 16
      %v391 = vrot.slane %v389, 5
      %v392 = vsel %vm322, %v387, %v391
      %v394 = vshrl.u32 %v314, 16
      %v396 = vrot.slane %v394, 4
      %v397 = vshll.u32 %v314, 16
      %v399 = vrot.slane %v397, 5
      %v400 = vor.u32 %v396, %v399
      %v401 = vrot.slane %v400, 4
      %v403 = vshll.u32 %v315, 16
      %v405 = vrot.slane %v403, 5
      %v406 = vsel %vm322, %v401, %v405
      %v408 = vshrl.u32 %v316, 16
      %v410 = vrot.slane %v408, 4
      %v411 = vshll.u32 %v316, 16
      %v413 = vrot.slane %v411, 5
      %v414 = vor.u32 %v410, %v413
      %v415 = vrot.slane %v414, 4
      %v417 = vshll.u32 %v317, 16
      %v419 = vrot.slane %v417, 5
      %v420 = vsel %vm322, %v415, %v419
      %v422 = vshrl.u32 %v318, 16
      %v424 = vrot.slane %v422, 4
      %v425 = vshll.u32 %v318, 16
      %v427 = vrot.slane %v425, 5
      %v428 = vor.u32 %v424, %v427
      %v429 = vrot.slane %v428, 4
      %v431 = vshll.u32 %v319, 16
      %v433 = vrot.slane %v431, 5
      %v434 = vsel %vm322, %v429, %v433
      %435 = vrot.lane.b32.xlu0 %v336, 8
      %v436 = vpop.permute.xlu0 %435
      %437 = vrot.lane.b32.xlu0 %v350, 8
      %v438 = vpop.permute.xlu0 %437
      %439 = vrot.lane.b32.xlu0 %v364, 8
      %v440 = vpop.permute.xlu0 %439
      %441 = vrot.lane.b32.xlu0 %v378, 8
      %v442 = vpop.permute.xlu0 %441
      %443 = vrot.lane.b32.xlu0 %v392, 8
      %v444 = vpop.permute.xlu0 %443
      %445 = vrot.lane.b32.xlu0 %v406, 8
      %v446 = vpop.permute.xlu0 %445
      %447 = vrot.lane.b32.xlu0 %v420, 8
      %v448 = vpop.permute.xlu0 %447
      %449 = vrot.lane.b32.xlu0 %v434, 8
      %v450 = vpop.permute.xlu0 %449
      %vm459 = vcmask 126016
      %460 = vst.msk [vmem:[#allocation2] sm:$0xf] %vm459, %v436
      %461 = vst.msk [vmem:[#allocation2 + $0x4] sm:$0xf] %vm459, %v438
      %462 = vst.msk [vmem:[#allocation2 + $0x8] sm:$0xf] %vm459, %v440
      %463 = vst.msk [vmem:[#allocation2 + $0xc] sm:$0xf] %vm459, %v442
      %464 = vst.msk [vmem:[#allocation2 + $0x10] sm:$0xf] %vm459, %v444
      %465 = vst.msk [vmem:[#allocation2 + $0x14] sm:$0xf] %vm459, %v446
      %466 = vst.msk [vmem:[#allocation2 + $0x18] sm:$0xf] %vm459, %v448
      %467 = vst.msk [vmem:[#allocation2 + $0x1c] sm:$0xf] %vm459, %v450
      %s468 = scalar_lea.vmem %s258, 8
      %v469 = vld [vmem:[%s468] sm:$0xf]
      %v470 = vld [vmem:[%s468 + $0x10] sm:$0xf]
      %v471 = vld [vmem:[%s468 + $0x20] sm:$0xf]
      %v472 = vld [vmem:[%s468 + $0x30] sm:$0xf]
      %v473 = vld [vmem:[%s468 + $0x40] sm:$0xf]
      %v474 = vld [vmem:[%s468 + $0x50] sm:$0xf]
      %v475 = vld [vmem:[%s468 + $0x60] sm:$0xf]
      %v476 = vld [vmem:[%s468 + $0x70] sm:$0xf]
      %485 = vrot.lane.b32.xlu0 %v469, 16
      %v486 = vpop.permute.xlu0 %485
      %487 = vrot.lane.b32.xlu0 %v470, 16
      %v488 = vpop.permute.xlu0 %487
      %489 = vrot.lane.b32.xlu0 %v471, 16
      %v490 = vpop.permute.xlu0 %489
      %491 = vrot.lane.b32.xlu0 %v472, 16
      %v492 = vpop.permute.xlu0 %491
      %493 = vrot.lane.b32.xlu0 %v473, 16
      %v494 = vpop.permute.xlu0 %493
      %495 = vrot.lane.b32.xlu0 %v474, 16
      %v496 = vpop.permute.xlu0 %495
      %497 = vrot.lane.b32.xlu0 %v475, 16
      %v498 = vpop.permute.xlu0 %497
      %499 = vrot.lane.b32.xlu0 %v476, 16
      %v500 = vpop.permute.xlu0 %499
      %vm509 = vcmask 191616
      %510 = vst.msk [vmem:[#allocation2] sm:$0xf] %vm509, %v486
      %511 = vst.msk [vmem:[#allocation2 + $0x4] sm:$0xf] %vm509, %v488
      %512 = vst.msk [vmem:[#allocation2 + $0x8] sm:$0xf] %vm509, %v490
      %513 = vst.msk [vmem:[#allocation2 + $0xc] sm:$0xf] %vm509, %v492
      %514 = vst.msk [vmem:[#allocation2 + $0x10] sm:$0xf] %vm509, %v494
      %515 = vst.msk [vmem:[#allocation2 + $0x14] sm:$0xf] %vm509, %v496
      %516 = vst.msk [vmem:[#allocation2 + $0x18] sm:$0xf] %vm509, %v498
      %517 = vst.msk [vmem:[#allocation2 + $0x1c] sm:$0xf] %vm509, %v500
      %v518 = vld [vmem:[%s468] sm:$0xf]
      %v519 = vld [vmem:[%s468 + $0x4] sm:$0x1]
      %v520 = vld [vmem:[%s468 + $0x10] sm:$0xf]
      %v521 = vld [vmem:[%s468 + $0x14] sm:$0x1]
      %v522 = vld [vmem:[%s468 + $0x20] sm:$0xf]
      %v523 = vld [vmem:[%s468 + $0x24] sm:$0x1]
      %v524 = vld [vmem:[%s468 + $0x30] sm:$0xf]
      %v525 = vld [vmem:[%s468 + $0x34] sm:$0x1]
      %v526 = vld [vmem:[%s468 + $0x40] sm:$0xf]
      %v527 = vld [vmem:[%s468 + $0x44] sm:$0x1]
      %v528 = vld [vmem:[%s468 + $0x50] sm:$0xf]
      %v529 = vld [vmem:[%s468 + $0x54] sm:$0x1]
      %v530 = vld [vmem:[%s468 + $0x60] sm:$0xf]
      %v531 = vld [vmem:[%s468 + $0x64] sm:$0x1]
      %v532 = vld [vmem:[%s468 + $0x70] sm:$0xf]
      %v533 = vld [vmem:[%s468 + $0x74] sm:$0x1]
      %v535 = vshrl.u32 %v518, 16
      %v537 = vrot.slane %v535, 4
      %v538 = vshll.u32 %v518, 16
      %v540 = vrot.slane %v538, 5
      %v541 = vor.u32 %v537, %v540
      %v542 = vrot.slane %v541, 4
      %v544 = vshll.u32 %v519, 16
      %v546 = vrot.slane %v544, 5
      %v547 = vsel %vm322, %v542, %v546
      %v549 = vshrl.u32 %v520, 16
      %v551 = vrot.slane %v549, 4
      %v552 = vshll.u32 %v520, 16
      %v554 = vrot.slane %v552, 5
      %v555 = vor.u32 %v551, %v554
      %v556 = vrot.slane %v555, 4
      %v558 = vshll.u32 %v521, 16
      %v560 = vrot.slane %v558, 5
      %v561 = vsel %vm322, %v556, %v560
      %v563 = vshrl.u32 %v522, 16
      %v565 = vrot.slane %v563, 4
      %v566 = vshll.u32 %v522, 16
      %v568 = vrot.slane %v566, 5
      %v569 = vor.u32 %v565, %v568
      %v570 = vrot.slane %v569, 4
      %v572 = vshll.u32 %v523, 16
      %v574 = vrot.slane %v572, 5
      %v575 = vsel %vm322, %v570, %v574
      %v577 = vshrl.u32 %v524, 16
      %v579 = vrot.slane %v577, 4
      %v580 = vshll.u32 %v524, 16
      %v582 = vrot.slane %v580, 5
      %v583 = vor.u32 %v579, %v582
      %v584 = vrot.slane %v583, 4
      %v586 = vshll.u32 %v525, 16
      %v588 = vrot.slane %v586, 5
      %v589 = vsel %vm322, %v584, %v588
      %v591 = vshrl.u32 %v526, 16
      %v593 = vrot.slane %v591, 4
      %v594 = vshll.u32 %v526, 16
      %v596 = vrot.slane %v594, 5
      %v597 = vor.u32 %v593, %v596
      %v598 = vrot.slane %v597, 4
      %v600 = vshll.u32 %v527, 16
      %v602 = vrot.slane %v600, 5
      %v603 = vsel %vm322, %v598, %v602
      %v605 = vshrl.u32 %v528, 16
      %v607 = vrot.slane %v605, 4
      %v608 = vshll.u32 %v528, 16
      %v610 = vrot.slane %v608, 5
      %v611 = vor.u32 %v607, %v610
      %v612 = vrot.slane %v611, 4
      %v614 = vshll.u32 %v529, 16
      %v616 = vrot.slane %v614, 5
      %v617 = vsel %vm322, %v612, %v616
      %v619 = vshrl.u32 %v530, 16
      %v621 = vrot.slane %v619, 4
      %v622 = vshll.u32 %v530, 16
      %v624 = vrot.slane %v622, 5
      %v625 = vor.u32 %v621, %v624
      %v626 = vrot.slane %v625, 4
      %v628 = vshll.u32 %v531, 16
      %v630 = vrot.slane %v628, 5
      %v631 = vsel %vm322, %v626, %v630
      %v633 = vshrl.u32 %v532, 16
      %v635 = vrot.slane %v633, 4
      %v636 = vshll.u32 %v532, 16
      %v638 = vrot.slane %v636, 5
      %v639 = vor.u32 %v635, %v638
      %v640 = vrot.slane %v639, 4
      %v642 = vshll.u32 %v533, 16
      %v644 = vrot.slane %v642, 5
      %v645 = vsel %vm322, %v640, %v644
      %646 = vrot.lane.b32.xlu0 %v547, 24
      %v647 = vpop.permute.xlu0 %646
      %648 = vrot.lane.b32.xlu0 %v561, 24
      %v649 = vpop.permute.xlu0 %648
      %650 = vrot.lane.b32.xlu0 %v575, 24
      %v651 = vpop.permute.xlu0 %650
      %652 = vrot.lane.b32.xlu0 %v589, 24
      %v653 = vpop.permute.xlu0 %652
      %654 = vrot.lane.b32.xlu0 %v603, 24
      %v655 = vpop.permute.xlu0 %654
      %656 = vrot.lane.b32.xlu0 %v617, 24
      %v657 = vpop.permute.xlu0 %656
      %658 = vrot.lane.b32.xlu0 %v631, 24
      %v659 = vpop.permute.xlu0 %658
      %660 = vrot.lane.b32.xlu0 %v645, 24
      %v661 = vpop.permute.xlu0 %660
      %vm670 = vcmask 257216
      %671 = vst.msk [vmem:[#allocation2] sm:$0xf] %vm670, %v647
      %672 = vst.msk [vmem:[#allocation2 + $0x4] sm:$0xf] %vm670, %v649
      %673 = vst.msk [vmem:[#allocation2 + $0x8] sm:$0xf] %vm670, %v651
      %674 = vst.msk [vmem:[#allocation2 + $0xc] sm:$0xf] %vm670, %v653
      %675 = vst.msk [vmem:[#allocation2 + $0x10] sm:$0xf] %vm670, %v655
      %676 = vst.msk [vmem:[#allocation2 + $0x14] sm:$0xf] %vm670, %v657
      %677 = vst.msk [vmem:[#allocation2 + $0x18] sm:$0xf] %vm670, %v659
      %678 = vst.msk [vmem:[#allocation2 + $0x1c] sm:$0xf] %vm670, %v661
      %s679 = scalar_lea.vmem %s258, 16
      %v680 = vld [vmem:[%s679] sm:$0xf]
      %v681 = vld [vmem:[%s679 + $0x10] sm:$0xf]
      %v682 = vld [vmem:[%s679 + $0x20] sm:$0xf]
      %v683 = vld [vmem:[%s679 + $0x30] sm:$0xf]
      %v684 = vld [vmem:[%s679 + $0x40] sm:$0xf]
      %v685 = vld [vmem:[%s679 + $0x50] sm:$0xf]
      %v686 = vld [vmem:[%s679 + $0x60] sm:$0xf]
      %694 = vrot.lane.b32.xlu0 %v680, 32
      %v695 = vpop.permute.xlu0 %694
      %696 = vrot.lane.b32.xlu0 %v681, 32
      %v697 = vpop.permute.xlu0 %696
      %698 = vrot.lane.b32.xlu0 %v682, 32
      %v699 = vpop.permute.xlu0 %698
      %700 = vrot.lane.b32.xlu0 %v683, 32
      %v701 = vpop.permute.xlu0 %700
      %702 = vrot.lane.b32.xlu0 %v684, 32
      %v703 = vpop.permute.xlu0 %702
      %704 = vrot.lane.b32.xlu0 %v685, 32
      %v705 = vpop.permute.xlu0 %704
      %706 = vrot.lane.b32.xlu0 %v686, 32
      %v707 = vpop.permute.xlu0 %706
      %vm715 = vcmask 322816
      %716 = vst.msk [vmem:[#allocation2] sm:$0xf] %vm715, %v695
      %717 = vst.msk [vmem:[#allocation2 + $0x4] sm:$0xf] %vm715, %v697
      %718 = vst.msk [vmem:[#allocation2 + $0x8] sm:$0xf] %vm715, %v699
      %719 = vst.msk [vmem:[#allocation2 + $0xc] sm:$0xf] %vm715, %v701
      %720 = vst.msk [vmem:[#allocation2 + $0x10] sm:$0xf] %vm715, %v703
      %721 = vst.msk [vmem:[#allocation2 + $0x14] sm:$0xf] %vm715, %v705
      %722 = vst.msk [vmem:[#allocation2 + $0x18] sm:$0xf] %vm715, %v707
      %v723 = vld [vmem:[%s276] sm:$0xf]
      %725 = vrot.lane.b32.xlu0 %v723, 32
      %v726 = vpop.permute.xlu0 %725
      %728 = vst.msk [vmem:[#allocation2 + $0x1c] sm:$0xf] %vm715, %v726
      %v729 = vld [vmem:[%s679] sm:$0xf]
      %v730 = vld [vmem:[%s679 + $0x4] sm:$0x1]
      %v731 = vld [vmem:[%s679 + $0x10] sm:$0xf]
      %v732 = vld [vmem:[%s679 + $0x14] sm:$0x1]
      %v733 = vld [vmem:[%s679 + $0x20] sm:$0xf]
      %v734 = vld [vmem:[%s679 + $0x24] sm:$0x1]
      %v735 = vld [vmem:[%s679 + $0x30] sm:$0xf]
      %v736 = vld [vmem:[%s679 + $0x34] sm:$0x1]
      %v737 = vld [vmem:[%s679 + $0x40] sm:$0xf]
      %v738 = vld [vmem:[%s679 + $0x44] sm:$0x1]
      %v739 = vld [vmem:[%s679 + $0x50] sm:$0xf]
      %v740 = vld [vmem:[%s679 + $0x54] sm:$0x1]
      %v741 = vld [vmem:[%s679 + $0x60] sm:$0xf]
      %v742 = vld [vmem:[%s679 + $0x64] sm:$0x1]
      %v744 = vshrl.u32 %v729, 16
      %v746 = vrot.slane %v744, 4
      %v747 = vshll.u32 %v729, 16
      %v749 = vrot.slane %v747, 5
      %v750 = vor.u32 %v746, %v749
      %v751 = vrot.slane %v750, 4
      %v753 = vshll.u32 %v730, 16
      %v755 = vrot.slane %v753, 5
      %v756 = vsel %vm322, %v751, %v755
      %v758 = vshrl.u32 %v731, 16
      %v760 = vrot.slane %v758, 4
      %v761 = vshll.u32 %v731, 16
      %v763 = vrot.slane %v761, 5
      %v764 = vor.u32 %v760, %v763
      %v765 = vrot.slane %v764, 4
      %v767 = vshll.u32 %v732, 16
      %v769 = vrot.slane %v767, 5
      %v770 = vsel %vm322, %v765, %v769
      %v772 = vshrl.u32 %v733, 16
      %v774 = vrot.slane %v772, 4
      %v775 = vshll.u32 %v733, 16
      %v777 = vrot.slane %v775, 5
      %v778 = vor.u32 %v774, %v777
      %v779 = vrot.slane %v778, 4
      %v781 = vshll.u32 %v734, 16
      %v783 = vrot.slane %v781, 5
      %v784 = vsel %vm322, %v779, %v783
      %v786 = vshrl.u32 %v735, 16
      %v788 = vrot.slane %v786, 4
      %v789 = vshll.u32 %v735, 16
      %v791 = vrot.slane %v789, 5
      %v792 = vor.u32 %v788, %v791
      %v793 = vrot.slane %v792, 4
      %v795 = vshll.u32 %v736, 16
      %v797 = vrot.slane %v795, 5
      %v798 = vsel %vm322, %v793, %v797
      %v800 = vshrl.u32 %v737, 16
      %v802 = vrot.slane %v800, 4
      %v803 = vshll.u32 %v737, 16
      %v805 = vrot.slane %v803, 5
      %v806 = vor.u32 %v802, %v805
      %v807 = vrot.slane %v806, 4
      %v809 = vshll.u32 %v738, 16
      %v811 = vrot.slane %v809, 5
      %v812 = vsel %vm322, %v807, %v811
      %v814 = vshrl.u32 %v739, 16
      %v816 = vrot.slane %v814, 4
      %v817 = vshll.u32 %v739, 16
      %v819 = vrot.slane %v817, 5
      %v820 = vor.u32 %v816, %v819
      %v821 = vrot.slane %v820, 4
      %v823 = vshll.u32 %v740, 16
      %v825 = vrot.slane %v823, 5
      %v826 = vsel %vm322, %v821, %v825
      %v828 = vshrl.u32 %v741, 16
      %v830 = vrot.slane %v828, 4
      %v831 = vshll.u32 %v741, 16
      %v833 = vrot.slane %v831, 5
      %v834 = vor.u32 %v830, %v833
      %v835 = vrot.slane %v834, 4
      %v837 = vshll.u32 %v742, 16
      %v839 = vrot.slane %v837, 5
      %v840 = vsel %vm322, %v835, %v839
      %841 = vrot.lane.b32.xlu0 %v756, 40
      %v842 = vpop.permute.xlu0 %841
      %843 = vrot.lane.b32.xlu0 %v770, 40
      %v844 = vpop.permute.xlu0 %843
      %845 = vrot.lane.b32.xlu0 %v784, 40
      %v846 = vpop.permute.xlu0 %845
      %847 = vrot.lane.b32.xlu0 %v798, 40
      %v848 = vpop.permute.xlu0 %847
      %849 = vrot.lane.b32.xlu0 %v812, 40
      %v850 = vpop.permute.xlu0 %849
      %851 = vrot.lane.b32.xlu0 %v826, 40
      %v852 = vpop.permute.xlu0 %851
      %853 = vrot.lane.b32.xlu0 %v840, 40
      %v854 = vpop.permute.xlu0 %853
      %vm862 = vcmask 388416
      %863 = vst.msk [vmem:[#allocation2] sm:$0xf] %vm862, %v842
      %864 = vst.msk [vmem:[#allocation2 + $0x4] sm:$0xf] %vm862, %v844
      %865 = vst.msk [vmem:[#allocation2 + $0x8] sm:$0xf] %vm862, %v846
      %866 = vst.msk [vmem:[#allocation2 + $0xc] sm:$0xf] %vm862, %v848
      %867 = vst.msk [vmem:[#allocation2 + $0x10] sm:$0xf] %vm862, %v850
      %868 = vst.msk [vmem:[#allocation2 + $0x14] sm:$0xf] %vm862, %v852
      %869 = vst.msk [vmem:[#allocation2 + $0x18] sm:$0xf] %vm862, %v854
      %v870 = vld [vmem:[%s276] sm:$0xf]
      %v871 = vld [vmem:[%s276 + $0x4] sm:$0x1]
      %v873 = vshrl.u32 %v870, 16
      %v875 = vrot.slane %v873, 4
      %v876 = vshll.u32 %v870, 16
      %v878 = vrot.slane %v876, 5
      %v879 = vor.u32 %v875, %v878
      %v880 = vrot.slane %v879, 4
      %v882 = vshll.u32 %v871, 16
      %v884 = vrot.slane %v882, 5
      %v885 = vsel %vm322, %v880, %v884
      %886 = vrot.lane.b32.xlu0 %v885, 40
      %v887 = vpop.permute.xlu0 %886
      %889 = vst.msk [vmem:[#allocation2 + $0x1c] sm:$0xf] %vm862, %v887
      %s890 = scalar_lea.vmem %s258, 24
      %v891 = vld [vmem:[%s890] sm:$0xf]
      %v892 = vld [vmem:[%s890 + $0x10] sm:$0xf]
      %v893 = vld [vmem:[%s890 + $0x20] sm:$0xf]
      %v894 = vld [vmem:[%s890 + $0x30] sm:$0xf]
      %v895 = vld [vmem:[%s890 + $0x40] sm:$0xf]
      %v896 = vld [vmem:[%s890 + $0x50] sm:$0xf]
      %v897 = vld [vmem:[%s890 + $0x60] sm:$0xf]
      %905 = vrot.lane.b32.xlu0 %v891, 48
      %v906 = vpop.permute.xlu0 %905
      %907 = vrot.lane.b32.xlu0 %v892, 48
      %v908 = vpop.permute.xlu0 %907
      %909 = vrot.lane.b32.xlu0 %v893, 48
      %v910 = vpop.permute.xlu0 %909
      %911 = vrot.lane.b32.xlu0 %v894, 48
      %v912 = vpop.permute.xlu0 %911
      %913 = vrot.lane.b32.xlu0 %v895, 48
      %v914 = vpop.permute.xlu0 %913
      %915 = vrot.lane.b32.xlu0 %v896, 48
      %v916 = vpop.permute.xlu0 %915
      %917 = vrot.lane.b32.xlu0 %v897, 48
      %v918 = vpop.permute.xlu0 %917
      %vm926 = vcmask 454016
      %927 = vst.msk [vmem:[#allocation2] sm:$0xf] %vm926, %v906
      %928 = vst.msk [vmem:[#allocation2 + $0x4] sm:$0xf] %vm926, %v908
      %929 = vst.msk [vmem:[#allocation2 + $0x8] sm:$0xf] %vm926, %v910
      %930 = vst.msk [vmem:[#allocation2 + $0xc] sm:$0xf] %vm926, %v912
      %931 = vst.msk [vmem:[#allocation2 + $0x10] sm:$0xf] %vm926, %v914
      %932 = vst.msk [vmem:[#allocation2 + $0x14] sm:$0xf] %vm926, %v916
      %933 = vst.msk [vmem:[#allocation2 + $0x18] sm:$0xf] %vm926, %v918
      %s934 = scalar_lea.vmem %s276, 8
      %v935 = vld [vmem:[%s934] sm:$0xf]
      %937 = vrot.lane.b32.xlu0 %v935, 48
      %v938 = vpop.permute.xlu0 %937
      %940 = vst.msk [vmem:[#allocation2 + $0x1c] sm:$0xf] %vm926, %v938
      %v941 = vld [vmem:[%s890] sm:$0xf]
      %v942 = vld [vmem:[%s890 + $0x4] sm:$0x1]
      %v943 = vld [vmem:[%s890 + $0x10] sm:$0xf]
      %v944 = vld [vmem:[%s890 + $0x14] sm:$0x1]
      %v945 = vld [vmem:[%s890 + $0x20] sm:$0xf]
      %v946 = vld [vmem:[%s890 + $0x24] sm:$0x1]
      %v947 = vld [vmem:[%s890 + $0x30] sm:$0xf]
      %v948 = vld [vmem:[%s890 + $0x34] sm:$0x1]
      %v949 = vld [vmem:[%s890 + $0x40] sm:$0xf]
      %v950 = vld [vmem:[%s890 + $0x44] sm:$0x1]
      %v951 = vld [vmem:[%s890 + $0x50] sm:$0xf]
      %v952 = vld [vmem:[%s890 + $0x54] sm:$0x1]
      %v953 = vld [vmem:[%s890 + $0x60] sm:$0xf]
      %v954 = vld [vmem:[%s890 + $0x64] sm:$0x1]
      %v956 = vshrl.u32 %v941, 16
      %v958 = vrot.slane %v956, 4
      %v959 = vshll.u32 %v941, 16
      %v961 = vrot.slane %v959, 5
      %v962 = vor.u32 %v958, %v961
      %v963 = vrot.slane %v962, 4
      %v965 = vshll.u32 %v942, 16
      %v967 = vrot.slane %v965, 5
      %v968 = vsel %vm322, %v963, %v967
      %v970 = vshrl.u32 %v943, 16
      %v972 = vrot.slane %v970, 4
      %v973 = vshll.u32 %v943, 16
      %v975 = vrot.slane %v973, 5
      %v976 = vor.u32 %v972, %v975
      %v977 = vrot.slane %v976, 4
      %v979 = vshll.u32 %v944, 16
      %v981 = vrot.slane %v979, 5
      %v982 = vsel %vm322, %v977, %v981
      %v984 = vshrl.u32 %v945, 16
      %v986 = vrot.slane %v984, 4
      %v987 = vshll.u32 %v945, 16
      %v989 = vrot.slane %v987, 5
      %v990 = vor.u32 %v986, %v989
      %v991 = vrot.slane %v990, 4
      %v993 = vshll.u32 %v946, 16
      %v995 = vrot.slane %v993, 5
      %v996 = vsel %vm322, %v991, %v995
      %v998 = vshrl.u32 %v947, 16
      %v1000 = vrot.slane %v998, 4
      %v1001 = vshll.u32 %v947, 16
      %v1003 = vrot.slane %v1001, 5
      %v1004 = vor.u32 %v1000, %v1003
      %v1005 = vrot.slane %v1004, 4
      %v1007 = vshll.u32 %v948, 16
      %v1009 = vrot.slane %v1007, 5
      %v1010 = vsel %vm322, %v1005, %v1009
      %v1012 = vshrl.u32 %v949, 16
      %v1014 = vrot.slane %v1012, 4
      %v1015 = vshll.u32 %v949, 16
      %v1017 = vrot.slane %v1015, 5
      %v1018 = vor.u32 %v1014, %v1017
      %v1019 = vrot.slane %v1018, 4
      %v1021 = vshll.u32 %v950, 16
      %v1023 = vrot.slane %v1021, 5
      %v1024 = vsel %vm322, %v1019, %v1023
      %v1026 = vshrl.u32 %v951, 16
      %v1028 = vrot.slane %v1026, 4
      %v1029 = vshll.u32 %v951, 16
      %v1031 = vrot.slane %v1029, 5
      %v1032 = vor.u32 %v1028, %v1031
      %v1033 = vrot.slane %v1032, 4
      %v1035 = vshll.u32 %v952, 16
      %v1037 = vrot.slane %v1035, 5
      %v1038 = vsel %vm322, %v1033, %v1037
      %v1040 = vshrl.u32 %v953, 16
      %v1042 = vrot.slane %v1040, 4
      %v1043 = vshll.u32 %v953, 16
      %v1045 = vrot.slane %v1043, 5
      %v1046 = vor.u32 %v1042, %v1045
      %v1047 = vrot.slane %v1046, 4
      %v1049 = vshll.u32 %v954, 16
      %v1051 = vrot.slane %v1049, 5
      %v1052 = vsel %vm322, %v1047, %v1051
      %1053 = vrot.lane.b32.xlu0 %v968, 56
      %v1054 = vpop.permute.xlu0 %1053
      %1055 = vrot.lane.b32.xlu0 %v982, 56
      %v1056 = vpop.permute.xlu0 %1055
      %1057 = vrot.lane.b32.xlu0 %v996, 56
      %v1058 = vpop.permute.xlu0 %1057
      %1059 = vrot.lane.b32.xlu0 %v1010, 56
      %v1060 = vpop.permute.xlu0 %1059
      %1061 = vrot.lane.b32.xlu0 %v1024, 56
      %v1062 = vpop.permute.xlu0 %1061
      %1063 = vrot.lane.b32.xlu0 %v1038, 56
      %v1064 = vpop.permute.xlu0 %1063
      %1065 = vrot.lane.b32.xlu0 %v1052, 56
      %v1066 = vpop.permute.xlu0 %1065
      %vm1074 = vcmask 519616
      %1075 = vst.msk [vmem:[#allocation2] sm:$0xf] %vm1074, %v1054
      %1076 = vst.msk [vmem:[#allocation2 + $0x4] sm:$0xf] %vm1074, %v1056
      %1077 = vst.msk [vmem:[#allocation2 + $0x8] sm:$0xf] %vm1074, %v1058
      %1078 = vst.msk [vmem:[#allocation2 + $0xc] sm:$0xf] %vm1074, %v1060
      %1079 = vst.msk [vmem:[#allocation2 + $0x10] sm:$0xf] %vm1074, %v1062
      %1080 = vst.msk [vmem:[#allocation2 + $0x14] sm:$0xf] %vm1074, %v1064
      %1081 = vst.msk [vmem:[#allocation2 + $0x18] sm:$0xf] %vm1074, %v1066
      %v1082 = vld [vmem:[%s934] sm:$0xf]
      %v1083 = vld [vmem:[%s934 + $0x4] sm:$0x1]
      %v1085 = vshrl.u32 %v1082, 16
      %v1087 = vrot.slane %v1085, 4
      %v1088 = vshll.u32 %v1082, 16
      %v1090 = vrot.slane %v1088, 5
      %v1091 = vor.u32 %v1087, %v1090
      %v1092 = vrot.slane %v1091, 4
      %v1094 = vshll.u32 %v1083, 16
      %v1096 = vrot.slane %v1094, 5
      %v1097 = vsel %vm322, %v1092, %v1096
      %1098 = vrot.lane.b32.xlu0 %v1097, 56
      %v1099 = vpop.permute.xlu0 %1098
      %1101 = vst.msk [vmem:[#allocation2 + $0x1c] sm:$0xf] %vm1074, %v1099
      %v1102 = vld [vmem:[#allocation2] sm:$0xf]
      %v1103 = vld [vmem:[#allocation2 + $0x4] sm:$0xf]
      %v1104 = vld [vmem:[#allocation2 + $0x8] sm:$0xf]
      %v1105 = vld [vmem:[#allocation2 + $0xc] sm:$0xf]
      %v1106 = vld [vmem:[#allocation2 + $0x10] sm:$0xf]
      %v1107 = vld [vmem:[#allocation2 + $0x14] sm:$0xf]
      %v1108 = vld [vmem:[#allocation2 + $0x18] sm:$0xf]
      %v1109 = vld [vmem:[#allocation2 + $0x1c] sm:$0xf]
      %v1110 = vld [vmem:[%s2] sm:$0xf]
      %v1111 = vld [vmem:[%s2 + $0x4] sm:$0xf]
      %v1112 = vld [vmem:[%s2 + $0x8] sm:$0xf]
      %v1113 = vld [vmem:[%s2 + $0xc] sm:$0xf]
      %v1114 = vld [vmem:[%s2 + $0x10] sm:$0xf]
      %v1115 = vld [vmem:[%s2 + $0x14] sm:$0xf]
      %v1116 = vld [vmem:[%s2 + $0x18] sm:$0xf]
      %v1117 = vld [vmem:[%s2 + $0x1c] sm:$0xf]
      %v1126 = vunpack.c.l.b16 %v1102
      %v1127 = vunpack.c.l.b16 %v1103
      %v1128 = vunpack.c.l.b16 %v1104
      %v1129 = vunpack.c.l.b16 %v1105
      %v1130 = vunpack.c.l.b16 %v1106
      %v1131 = vunpack.c.l.b16 %v1107
      %v1132 = vunpack.c.l.b16 %v1108
      %v1133 = vunpack.c.l.b16 %v1109
      %v1134 = vpack.c.b16 %v1127, %v1126
      %v1135 = vpack.c.b16 %v1129, %v1128
      %v1136 = vpack.c.b16 %v1131, %v1130
      %v1137 = vpack.c.b16 %v1133, %v1132
      %v1146 = vunpack.c.l.b16 %v1110
      %v1147 = vunpack.c.l.b16 %v1111
      %v1148 = vunpack.c.l.b16 %v1112
      %v1149 = vunpack.c.l.b16 %v1113
      %v1150 = vunpack.c.l.b16 %v1114
      %v1151 = vunpack.c.l.b16 %v1115
      %v1152 = vunpack.c.l.b16 %v1116
      %v1153 = vunpack.c.l.b16 %v1117
      %v1154 = vpack.c.b16 %v1147, %v1146
      %v1155 = vpack.c.b16 %v1149, %v1148
      %v1156 = vpack.c.b16 %v1151, %v1150
      %v1157 = vpack.c.b16 %v1153, %v1152
      %vm1162 = vcmask 523264
      %v1164 = vsel %vm1162, %v1134, 0
      %v1167 = vsel %vm1162, %v1135, 0
      %v1170 = vsel %vm1162, %v1136, 0
      %v1173 = vsel %vm1162, %v1137, 0
      %1175 = vmatpush.bf16.msra.mxu0 0
      %1176 = vmatpush.bf16.msra.mxu0 0
      %1177 = vmatpush.bf16.msra.mxu0 0
      %1178 = vmatpush.bf16.msra.mxu0 0
      %1179 = vmatpush.bf16.msra.mxu0 %v1157
      %1180 = vmatpush.bf16.msra.mxu0 %v1156
      %1181 = vmatpush.bf16.msra.mxu0 %v1155
      %1182 = vmatpush.bf16.msra.mxu0 %v1154
      %1183 = vmatmul.bf16.gmra.mxu0 %v1164
      %v1184 = vpop.f32.mrf.mxu0
      %v1185 = vadd.f32 0.0, %v1184
      %v1186 = vpop.f32.mrf.mxu0
      %v1187 = vadd.f32 0.0, %v1186
      %1188 = vmatmul.bf16.gmra.mxu0 %v1167
      %v1189 = vpop.f32.mrf.mxu0
      %v1190 = vadd.f32 0.0, %v1189
      %v1191 = vpop.f32.mrf.mxu0
      %v1192 = vadd.f32 0.0, %v1191
      %1193 = vmatmul.bf16.gmra.mxu0 %v1170
      %v1194 = vpop.f32.mrf.mxu0
      %v1195 = vadd.f32 0.0, %v1194
      %v1196 = vpop.f32.mrf.mxu0
      %v1197 = vadd.f32 0.0, %v1196
      %1198 = vmatmul.bf16.gmra.mxu0 %v1173
      %v1199 = vpop.f32.mrf.mxu0
      %v1200 = vadd.f32 0.0, %v1199
      %v1201 = vpop.f32.mrf.mxu0
      %v1202 = vadd.f32 0.0, %v1201
      %1203 = vdwg.mxu0
      %vm1204 = vcmp.gt.f32.partialorder %v1185, 0.0
      %vm1205 = vcmp.gt.f32.partialorder %v1187, 0.0
      %vm1206 = vcmp.gt.f32.partialorder %v1190, 0.0
      %vm1207 = vcmp.gt.f32.partialorder %v1192, 0.0
      %vm1208 = vcmp.gt.f32.partialorder %v1195, 0.0
      %vm1209 = vcmp.gt.f32.partialorder %v1197, 0.0
      %vm1210 = vcmp.gt.f32.partialorder %v1200, 0.0
      %vm1211 = vcmp.gt.f32.partialorder %v1202, 0.0
      %v1212 = vmul.f32 %v1185, 0.2
      %v1213 = vmul.f32 %v1187, 0.2
      %v1214 = vmul.f32 %v1190, 0.2
      %v1215 = vmul.f32 %v1192, 0.2
      %v1216 = vmul.f32 %v1195, 0.2
      %v1217 = vmul.f32 %v1197, 0.2
      %v1218 = vmul.f32 %v1200, 0.2
      %v1219 = vmul.f32 %v1202, 0.2
      %v1220 = vsel %vm1204, %v1185, %v1212
      %v1221 = vsel %vm1205, %v1187, %v1213
      %v1222 = vsel %vm1206, %v1190, %v1214
      %v1223 = vsel %vm1207, %v1192, %v1215
      %v1224 = vsel %vm1208, %v1195, %v1216
      %v1225 = vsel %vm1209, %v1197, %v1217
      %v1226 = vsel %vm1210, %v1200, %v1218
      %v1227 = vsel %vm1211, %v1202, %v1219
      %1228 = vxpose.xlu0.b32.start [1/16] %v1220, 128
      %1229 = vxpose.xlu0.b32.cont [2/16] %v1221, 128
      %1230 = vxpose.xlu0.b32.cont [3/16] %v1222, 128
      %1231 = vxpose.xlu0.b32.cont [4/16] %v1223, 128
      %1232 = vxpose.xlu0.b32.cont [5/16] %v1224, 128
      %1233 = vxpose.xlu0.b32.cont [6/16] %v1225, 128
      %1234 = vxpose.xlu0.b32.cont [7/16] %v1226, 128
      %1235 = vxpose.xlu0.b32.cont [8/16] %v1227, 128
      %1236 = vxpose.xlu0.b32.cont [9/16] 0.0, 128
      %1237 = vxpose.xlu0.b32.cont [10/16] 0.0, 128
      %1238 = vxpose.xlu0.b32.cont [11/16] 0.0, 128
      %1239 = vxpose.xlu0.b32.cont [12/16] 0.0, 128
      %1240 = vxpose.xlu0.b32.cont [13/16] 0.0, 128
      %1241 = vxpose.xlu0.b32.cont [14/16] 0.0, 128
      %1242 = vxpose.xlu0.b32.cont [15/16] 0.0, 128
      %1243 = vxpose.xlu0.b32.end [16/16] 0.0, 128
      %v1244 = vpop.trf.xlu0
      %v1245 = vpop.trf.xlu0
      %v1246 = vpop.trf.xlu0
      %v1247 = vpop.trf.xlu0
      %v1248 = vpop.trf.xlu0
      %v1249 = vpop.trf.xlu0
      %v1250 = vpop.trf.xlu0
      %v1251 = vpop.trf.xlu0
      %v1252 = vpop.trf.xlu0
      %v1253 = vpop.trf.xlu0
      %v1254 = vpop.trf.xlu0
      %v1255 = vpop.trf.xlu0
      %v1256 = vpop.trf.xlu0
      %v1257 = vpop.trf.xlu0
      %v1258 = vpop.trf.xlu0
      %v1259 = vpop.trf.xlu0
      %1260 = vst.msk [vmem:[%s285] sm:$0xff] %vm1162, %v1244
      %p1261 = scmp.lt.s32.totalorder %s18, 1
      %s1262 = scalar_select %p1261, %s18, 1
      %p1263 = scmp.lt.s32.totalorder %s19, 0
      %s1264 = scalar_select %p1263, %s19, 0
      %s1265 = sadd.s32 %s1264, %s1262
      %s1266 = smul.addr %s1265, 8
      %s1267 = scalar_lea.vmem %s3, %s1266
      // Predicated region
      $region33: #{downsample_forward.1} parent=31 // pred_check
        %p1268 = pneg %p127
      $region34: #{downsample_forward.1} parent=31 // pred_check_branch
        %1270 = sbr.rel (%p1268) target = $region36
      $region35: #{downsample_forward.1} parent=31 // pred_region
        _
      $region36: #{downsample_forward.1} parent=31 // pred_fallthru
        _
    $region32: #{downsample_forward.1} parent=5 // pred_fallthru
      _
    %p1271 = scmp.le.s32.totalorder 2, %s9
    // Predicated region
    $region37: #{downsample_forward.1} parent=5 // pred_check
      %p1272 = pneg %p1271
    $region38: #{downsample_forward.1} parent=5 // pred_check_branch
      %1274 = sbr.rel (%p1272) target = $region40
    $region39: #{downsample_forward.1} parent=5 // pred_region
      %s1275 = ssub.s32 %s9, 2
      // Predicated region
      $region41: #{downsample_forward.1} parent=39 // pred_check
        %p1276 = pneg %p133
      $region42: #{downsample_forward.1} parent=39 // pred_check_branch
        %1278 = sbr.rel (%p1276) target = $region44
      $region43: #{downsample_forward.1} parent=39 // pred_region
        %p1279 = scmp.lt.s32.totalorder %s20, 1
        %s1280 = scalar_select %p1279, %s20, 1
        %p1281 = scmp.lt.s32.totalorder %s21, 0
        %s1282 = scalar_select %p1281, %s21, 0
        %s1283 = sadd.s32 %s1282, %s1280
        %s1284 = smul.addr %s1283, 8
        %s1285 = scalar_lea.vmem %s3, %s1284
      $region44: #{downsample_forward.1} parent=39 // pred_fallthru
        _
    $region40: #{downsample_forward.1} parent=5 // pred_fallthru
      _
  $region6: #{downsample_forward.1} parent=0 // loop_footer
    %s13 = sadd.s32 1, %s9
  $region7: #{downsample_forward.1} parent=0 // loop_footer_branch
    %8 = sbr.rel target = $region3
  $region8: #{downsample_forward.1} parent=0 // loop_exit
    _

</llo_original>
